<compile_context>
chip_gen: v7x
topology: tpu7x:2x2x1
jax: 0.10.0
libtpu: 0.0.40
codegen_flags: <defaults>
</compile_context>

<pallas_src>
import jax
import jax.numpy as jnp
from jax.experimental import pallas as pl
from jax.experimental.pallas import tpu as pltpu

BN_EPS = 1e-5


def _class_block_kernel(x_ref, wc_ref, gamma_ref, beta_ref, wl_ref, bl_ref,
                        feat_ref, logits_ref):
    # Per grid step (one PCB part):
    #   x_ref:     (B, Cin)      bf16
    #   wc_ref:    (NB, Cin)     bf16   1x1-conv weight (PyTorch layout, no transpose)
    #   gamma_ref: (1, NB) f32,  beta_ref: (1, NB) f32
    #   wl_ref:    (NCp, NB)     bf16   linear weight, NCp = NC padded to 128 lanes
    #   bl_ref:    (1, NCp)      f32    linear bias (zero in padded columns)
    #   feat_ref:  (B, NB)       f32
    #   logits_ref:(B, NCp)      f32
    x = x_ref[...]
    wc = wc_ref[...]

    # 1x1 conv on 1x1 spatial == matmul over channels; contract Cin (last dim of both).
    h = jax.lax.dot_general(x, wc, (((1,), (1,)), ((), ())),
                            preferred_element_type=jnp.float32)      # (B, NB) f32

    # BatchNorm2d, training mode (batch stats, biased variance), single reduction pass.
    inv_b = 1.0 / h.shape[0]
    mean = jnp.sum(h, axis=0, keepdims=True) * inv_b                 # (1, NB)
    mean_sq = jnp.sum(h * h, axis=0, keepdims=True) * inv_b
    var = mean_sq - mean * mean
    h_bn = (h - mean) * jax.lax.rsqrt(var + BN_EPS) * gamma_ref[...] + beta_ref[...]

    # ReLU
    feat = jnp.maximum(h_bn, 0.0)
    feat_ref[...] = feat.astype(feat_ref.dtype)

    # Linear classifier: contract NB (last dim of both); lane-dense NCp output.
    logits = jax.lax.dot_general(feat.astype(wl_ref.dtype), wl_ref[...],
                                 (((1,), (1,)), ((), ())),
                                 preferred_element_type=jnp.float32) + bl_ref[...]
    logits_ref[...] = logits.astype(logits_ref.dtype)


def class_block_forward_parts(x, conv_w, bn_gamma, bn_beta, lin_w, lin_b):
    """Fused forward of P PCB ClassBlocks in one pallas_call.

    x:        (P, B, Cin)
    conv_w:   (P, NB, Cin)
    bn_gamma: (P, NB), bn_beta: (P, NB)
    lin_w:    (P, NC, NB), lin_b: (P, NC)
    returns   feat (P, B, NB) f32, logits (P, B, NC) f32
    """
    P, B, Cin = x.shape
    NB = conv_w.shape[1]
    NC = lin_w.shape[1]
    NC_pad = ((NC + 127) // 128) * 128  # lane-dense classifier output

    # bf16 matmul operands (cast once, halves HBM weight traffic, native MXU path).
    x_bf = x.astype(jnp.bfloat16)
    wc_bf = conv_w.astype(jnp.bfloat16)
    wl_bf = lin_w.astype(jnp.bfloat16)
    bl = lin_b.astype(jnp.float32)
    if NC_pad != NC:
        # zero-padded columns -> padded logits are exactly 0 and get sliced off.
        wl_bf = jnp.pad(wl_bf, ((0, 0), (0, NC_pad - NC), (0, 0)))
        bl = jnp.pad(bl, ((0, 0), (0, NC_pad - NC)))

    gamma = bn_gamma.reshape(P, 1, NB).astype(jnp.float32)
    beta = bn_beta.reshape(P, 1, NB).astype(jnp.float32)
    bl = bl.reshape(P, 1, NC_pad)

    feat, logits_pad = pl.pallas_call(
        _class_block_kernel,
        out_shape=(
            jax.ShapeDtypeStruct((P, B, NB), jnp.float32),
            jax.ShapeDtypeStruct((P, B, NC_pad), jnp.float32),
        ),
        grid=(P,),
        in_specs=[
            pl.BlockSpec((None, B, Cin), lambda p: (p, 0, 0)),
            pl.BlockSpec((None, NB, Cin), lambda p: (p, 0, 0)),
            pl.BlockSpec((None, 1, NB), lambda p: (p, 0, 0)),
            pl.BlockSpec((None, 1, NB), lambda p: (p, 0, 0)),
            pl.BlockSpec((None, NC_pad, NB), lambda p: (p, 0, 0)),
            pl.BlockSpec((None, 1, NC_pad), lambda p: (p, 0, 0)),
        ],
        out_specs=(
            pl.BlockSpec((None, B, NB), lambda p: (p, 0, 0)),
            pl.BlockSpec((None, B, NC_pad), lambda p: (p, 0, 0)),
        ),
        # Parts are independent (each grid step sees its full batch, so BN stats
        # stay correct); "parallel" shards them across TensorCores on v7x.
        compiler_params=pltpu.CompilerParams(
            dimension_semantics=("parallel",)),
    )(x_bf, wc_bf, gamma, beta, wl_bf, bl)

    return feat, logits_pad[:, :, :NC]


def class_block_forward(x_nchw, conv_w, bn_gamma, bn_beta, lin_w, lin_b):
    """Single ClassBlock, matching the PyTorch module API.

    x_nchw: (B, Cin, 1, 1); conv_w: (NB, Cin, 1, 1); lin_w: (NC, NB); lin_b: (NC,)
    returns feat (B, NB, 1, 1), logits (B, NC)
    """
    B, Cin, H, W = x_nchw.shape
    assert H == 1 and W == 1, "PCB ClassBlock expects 1x1 spatial input"
    NB = conv_w.shape[0]
    feat, logits = class_block_forward_parts(
        x_nchw.reshape(1, B, Cin),
        conv_w.reshape(1, NB, Cin),
        bn_gamma.reshape(1, NB),
        bn_beta.reshape(1, NB),
        lin_w[None],
        lin_b[None],
    )
    return feat[0].reshape(B, NB, 1, 1), logits[0]


def init_class_block_params(key, input_dim, class_num, num_bottleneck=512):
    """Matches weights_init_kaiming / weights_init_classifier in the spec."""
    k_conv, k_lin = jax.random.split(key, 2)
    # Conv2d: kaiming_normal_(mode='fan_out', relu): std = sqrt(2 / fan_out)
    conv_std = (2.0 / num_bottleneck) ** 0.5
    conv_w = conv_std * jax.random.normal(
        k_conv, (num_bottleneck, input_dim), dtype=jnp.float32)
    # BatchNorm2d: weight = 1, bias = 0
    bn_gamma = jnp.ones((num_bottleneck,), dtype=jnp.float32)
    bn_beta = jnp.zeros((num_bottleneck,), dtype=jnp.float32)
    # Linear: weight ~ N(0, 0.001), bias = 0
    lin_w = 0.001 * jax.random.normal(
        k_lin, (class_num, num_bottleneck), dtype=jnp.float32)
    lin_b = jnp.zeros((class_num,), dtype=jnp.float32)
    return conv_w, bn_gamma, bn_beta, lin_w, lin_b


def _ref_forward_part(x, conv_w, gamma, beta, lin_w, lin_b):
    """Pure-JAX reference with the same bf16-operand / f32-accumulate recipe."""
    h = jnp.einsum('bc,nc->bn', x.astype(jnp.bfloat16), conv_w.astype(jnp.bfloat16),
                   preferred_element_type=jnp.float32)
    mean = jnp.mean(h, axis=0, keepdims=True)
    var = jnp.mean(h * h, axis=0, keepdims=True) - mean * mean
    feat = jnp.maximum((h - mean) * jax.lax.rsqrt(var + BN_EPS) * gamma + beta, 0.0)
    logits = jnp.einsum('bn,cn->bc', feat.astype(jnp.bfloat16),
                        lin_w.astype(jnp.bfloat16),
                        preferred_element_type=jnp.float32) + lin_b
    return feat, logits


if __name__ == "__main__":
    key = jax.random.PRNGKey(0)
    k_x, k_p = jax.random.split(key)

    # Small shapes consistent with the module (6 PCB parts fused into one call).
    P, B, input_dim, class_num, num_bottleneck = 6, 8, 64, 16, 256

    # Stacked per-part parameters.
    part_keys = jax.random.split(k_p, P)
    conv_w = jnp.stack([init_class_block_params(k, input_dim, class_num, num_bottleneck)[0]
                        for k in part_keys])                       # (P, NB, Cin)
    bn_gamma = jnp.ones((P, num_bottleneck), dtype=jnp.float32)
    bn_beta = jnp.zeros((P, num_bottleneck), dtype=jnp.float32)
    lin_w = jnp.stack([init_class_block_params(k, input_dim, class_num, num_bottleneck)[3]
                       for k in part_keys])                        # (P, NC, NB)
    lin_b = jnp.zeros((P, class_num), dtype=jnp.float32)

    x_parts = jax.random.normal(k_x, (P, B, input_dim), dtype=jnp.float32)

    # --- fused multi-part path ---
    feat_p, logits_p = class_block_forward_parts(
        x_parts, conv_w, bn_gamma, bn_beta, lin_w, lin_b)
    jax.block_until_ready((feat_p, logits_p))
    assert feat_p.shape == (P, B, num_bottleneck)
    assert logits_p.shape == (P, B, class_num)

    # numerical sanity check vs pure-JAX reference
    ref_feat, ref_logits = jax.vmap(_ref_forward_part)(
        x_parts, conv_w, bn_gamma, bn_beta, lin_w, lin_b)
    assert bool(jnp.allclose(feat_p, ref_feat, rtol=5e-2, atol=5e-3)), "feat mismatch"
    assert bool(jnp.allclose(logits_p, ref_logits, rtol=5e-2, atol=5e-3)), "logits mismatch"

    # --- single-block (module-shaped) path ---
    x_nchw = x_parts[0].reshape(B, input_dim, 1, 1)
    feat1, logits1 = class_block_forward(
        x_nchw, conv_w[0].reshape(num_bottleneck, input_dim, 1, 1),
        bn_gamma[0], bn_beta[0], lin_w[0], lin_b[0])
    jax.block_until_ready((feat1, logits1))
    assert feat1.shape == (B, num_bottleneck, 1, 1)
    assert logits1.shape == (B, class_num)

    print("KERNEL_OK")
</pallas_src>

<mosaic_0001>
module attributes {stable_mosaic.version = 11 : i64} {
  func.func @_class_block_kernel(%arg0: i32, %arg1: memref<1x8x64xbf16, #tpu.memory_space<vmem>>, %arg2: memref<1x256x64xbf16, #tpu.memory_space<vmem>>, %arg3: memref<1x1x256xf32, #tpu.memory_space<vmem>>, %arg4: memref<1x1x256xf32, #tpu.memory_space<vmem>>, %arg5: memref<1x128x256xbf16, #tpu.memory_space<vmem>>, %arg6: memref<1x1x128xf32, #tpu.memory_space<vmem>>, %arg7: memref<1x8x256xf32, #tpu.memory_space<vmem>>, %arg8: memref<1x8x128xf32, #tpu.memory_space<vmem>>) attributes {dimension_semantics = [#tpu.dimension_semantics<parallel>], iteration_bounds = array<i64: 6>, scalar_prefetch = 0 : i64, scratch_operands = 0 : i64, tpu.core_type = #tpu.core_type<tc>, window_params = [{transform_indices = @transform_0, window_bounds = array<i64: 1, 8, 64>}, {transform_indices = @transform_1, window_bounds = array<i64: 1, 256, 64>}, {transform_indices = @transform_2, window_bounds = array<i64: 1, 1, 256>}, {transform_indices = @transform_3, window_bounds = array<i64: 1, 1, 256>}, {transform_indices = @transform_4, window_bounds = array<i64: 1, 128, 256>}, {transform_indices = @transform_5, window_bounds = array<i64: 1, 1, 128>}, {transform_indices = @transform_6, window_bounds = array<i64: 1, 8, 256>}, {transform_indices = @transform_7, window_bounds = array<i64: 1, 8, 128>}]} {
    %c0 = arith.constant 0 : index
    %c0_0 = arith.constant 0 : index
    %c0_1 = arith.constant 0 : index
    %0 = vector.load %arg1[%c0, %c0_0, %c0_1] : memref<1x8x64xbf16, #tpu.memory_space<vmem>>, vector<1x8x64xbf16>
    %1 = vector.shape_cast %0 : vector<1x8x64xbf16> to vector<8x64xbf16>
    %c0_2 = arith.constant 0 : index
    %c0_3 = arith.constant 0 : index
    %c0_4 = arith.constant 0 : index
    %2 = vector.load %arg2[%c0_2, %c0_3, %c0_4] : memref<1x256x64xbf16, #tpu.memory_space<vmem>>, vector<1x256x64xbf16>
    %3 = vector.shape_cast %2 : vector<1x256x64xbf16> to vector<256x64xbf16>
    %cst = arith.constant dense<0.000000e+00> : vector<8x256xf32>
    %4 = tpu.matmul %1, %3, %cst {dimension_numbers = #tpu.dot_dimension_numbers<[1], [1], [0], [0], [0, 0, 1, 0], [], []>} : vector<8x64xbf16>, vector<256x64xbf16>, vector<8x256xf32> -> vector<8x256xf32>
    %cst_5 = arith.constant dense<0.000000e+00> : vector<256xf32>
    %5 = vector.multi_reduction <add>, %4, %cst_5 [0] : vector<8x256xf32> to vector<256xf32>
    %6 = vector.shape_cast %5 : vector<256xf32> to vector<1x256xf32>
    %cst_6 = arith.constant 1.250000e-01 : f32
    %7 = vector.broadcast %cst_6 : f32 to vector<1x256xf32>
    %8 = arith.mulf %6, %7 : vector<1x256xf32>
    %9 = arith.mulf %4, %4 : vector<8x256xf32>
    %cst_7 = arith.constant dense<0.000000e+00> : vector<256xf32>
    %10 = vector.multi_reduction <add>, %9, %cst_7 [0] : vector<8x256xf32> to vector<256xf32>
    %11 = vector.shape_cast %10 : vector<256xf32> to vector<1x256xf32>
    %cst_8 = arith.constant 1.250000e-01 : f32
    %12 = vector.broadcast %cst_8 : f32 to vector<1x256xf32>
    %13 = arith.mulf %11, %12 : vector<1x256xf32>
    %14 = arith.mulf %8, %8 : vector<1x256xf32>
    %15 = arith.subf %13, %14 : vector<1x256xf32>
    %16 = vector.broadcast %8 : vector<1x256xf32> to vector<8x256xf32>
    %17 = arith.subf %4, %16 : vector<8x256xf32>
    %cst_9 = arith.constant 9.99999974E-6 : f32
    %18 = vector.broadcast %cst_9 : f32 to vector<1x256xf32>
    %19 = arith.addf %15, %18 : vector<1x256xf32>
    %20 = math.rsqrt %19 : vector<1x256xf32>
    %21 = vector.broadcast %20 : vector<1x256xf32> to vector<8x256xf32>
    %22 = arith.mulf %17, %21 : vector<8x256xf32>
    %c0_10 = arith.constant 0 : index
    %c0_11 = arith.constant 0 : index
    %c0_12 = arith.constant 0 : index
    %23 = vector.load %arg3[%c0_10, %c0_11, %c0_12] : memref<1x1x256xf32, #tpu.memory_space<vmem>>, vector<1x1x256xf32>
    %24 = vector.shape_cast %23 : vector<1x1x256xf32> to vector<1x256xf32>
    %25 = vector.broadcast %24 : vector<1x256xf32> to vector<8x256xf32>
    %26 = arith.mulf %22, %25 : vector<8x256xf32>
    %c0_13 = arith.constant 0 : index
    %c0_14 = arith.constant 0 : index
    %c0_15 = arith.constant 0 : index
    %27 = vector.load %arg4[%c0_13, %c0_14, %c0_15] : memref<1x1x256xf32, #tpu.memory_space<vmem>>, vector<1x1x256xf32>
    %28 = vector.shape_cast %27 : vector<1x1x256xf32> to vector<1x256xf32>
    %29 = vector.broadcast %28 : vector<1x256xf32> to vector<8x256xf32>
    %30 = arith.addf %26, %29 : vector<8x256xf32>
    %cst_16 = arith.constant 0.000000e+00 : f32
    %31 = vector.broadcast %cst_16 : f32 to vector<8x256xf32>
    %32 = arith.maximumf %30, %31 : vector<8x256xf32>
    %c0_17 = arith.constant 0 : index
    %c0_18 = arith.constant 0 : index
    %c0_19 = arith.constant 0 : index
    %33 = vector.load %arg7[%c0_17, %c0_18, %c0_19] : memref<1x8x256xf32, #tpu.memory_space<vmem>>, vector<1x8x256xf32>
    %34 = vector.shape_cast %33 : vector<1x8x256xf32> to vector<8x256xf32>
    %35 = vector.shape_cast %32 : vector<8x256xf32> to vector<1x8x256xf32>
    tpu.vector_store %arg7[%c0_17, %c0_18, %c0_19], %35 {strides = array<i32>} : memref<1x8x256xf32, #tpu.memory_space<vmem>>, vector<1x8x256xf32>,
    %36 = arith.truncf %32 : vector<8x256xf32> to vector<8x256xbf16>
    %c0_20 = arith.constant 0 : index
    %c0_21 = arith.constant 0 : index
    %c0_22 = arith.constant 0 : index
    %37 = vector.load %arg5[%c0_20, %c0_21, %c0_22] : memref<1x128x256xbf16, #tpu.memory_space<vmem>>, vector<1x128x256xbf16>
    %38 = vector.shape_cast %37 : vector<1x128x256xbf16> to vector<128x256xbf16>
    %cst_23 = arith.constant dense<0.000000e+00> : vector<8x128xf32>
    %39 = tpu.matmul %36, %38, %cst_23 {dimension_numbers = #tpu.dot_dimension_numbers<[1], [1], [0], [0], [0, 0, 1, 0], [], []>} : vector<8x256xbf16>, vector<128x256xbf16>, vector<8x128xf32> -> vector<8x128xf32>
    %c0_24 = arith.constant 0 : index
    %c0_25 = arith.constant 0 : index
    %c0_26 = arith.constant 0 : index
    %40 = vector.load %arg6[%c0_24, %c0_25, %c0_26] : memref<1x1x128xf32, #tpu.memory_space<vmem>>, vector<1x1x128xf32>
    %41 = vector.shape_cast %40 : vector<1x1x128xf32> to vector<1x128xf32>
    %42 = vector.broadcast %41 : vector<1x128xf32> to vector<8x128xf32>
    %43 = arith.addf %39, %42 : vector<8x128xf32>
    %c0_27 = arith.constant 0 : index
    %c0_28 = arith.constant 0 : index
    %c0_29 = arith.constant 0 : index
    %44 = vector.load %arg8[%c0_27, %c0_28, %c0_29] : memref<1x8x128xf32, #tpu.memory_space<vmem>>, vector<1x8x128xf32>
    %45 = vector.shape_cast %44 : vector<1x8x128xf32> to vector<8x128xf32>
    %46 = vector.shape_cast %43 : vector<8x128xf32> to vector<1x8x128xf32>
    tpu.vector_store %arg8[%c0_27, %c0_28, %c0_29], %46 {strides = array<i32>} : memref<1x8x128xf32, #tpu.memory_space<vmem>>, vector<1x8x128xf32>,
    return
  }
  func.func @transform_0(%arg0: i32) -> (i32, i32, i32) {
    %c0_i32 = arith.constant 0 : i32
    %c0_i32_0 = arith.constant 0 : i32
    %c0_i32_1 = arith.constant 0 : i32
    return %arg0, %c0_i32, %c0_i32_0 : i32, i32, i32
  }
  func.func @transform_1(%arg0: i32) -> (i32, i32, i32) {
    %c0_i32 = arith.constant 0 : i32
    %c0_i32_0 = arith.constant 0 : i32
    %c0_i32_1 = arith.constant 0 : i32
    return %arg0, %c0_i32, %c0_i32_0 : i32, i32, i32
  }
  func.func @transform_2(%arg0: i32) -> (i32, i32, i32) {
    %c0_i32 = arith.constant 0 : i32
    %c0_i32_0 = arith.constant 0 : i32
    %c0_i32_1 = arith.constant 0 : i32
    return %arg0, %c0_i32, %c0_i32_0 : i32, i32, i32
  }
  func.func @transform_3(%arg0: i32) -> (i32, i32, i32) {
    %c0_i32 = arith.constant 0 : i32
    %c0_i32_0 = arith.constant 0 : i32
    %c0_i32_1 = arith.constant 0 : i32
    return %arg0, %c0_i32, %c0_i32_0 : i32, i32, i32
  }
  func.func @transform_4(%arg0: i32) -> (i32, i32, i32) {
    %c0_i32 = arith.constant 0 : i32
    %c0_i32_0 = arith.constant 0 : i32
    %c0_i32_1 = arith.constant 0 : i32
    return %arg0, %c0_i32, %c0_i32_0 : i32, i32, i32
  }
  func.func @transform_5(%arg0: i32) -> (i32, i32, i32) {
    %c0_i32 = arith.constant 0 : i32
    %c0_i32_0 = arith.constant 0 : i32
    %c0_i32_1 = arith.constant 0 : i32
    return %arg0, %c0_i32, %c0_i32_0 : i32, i32, i32
  }
  func.func @transform_6(%arg0: i32) -> (i32, i32, i32) {
    %c0_i32 = arith.constant 0 : i32
    %c0_i32_0 = arith.constant 0 : i32
    %c0_i32_1 = arith.constant 0 : i32
    return %arg0, %c0_i32, %c0_i32_0 : i32, i32, i32
  }
  func.func @transform_7(%arg0: i32) -> (i32, i32, i32) {
    %c0_i32 = arith.constant 0 : i32
    %c0_i32_0 = arith.constant 0 : i32
    %c0_i32_1 = arith.constant 0 : i32
    return %arg0, %c0_i32, %c0_i32_0 : i32, i32, i32
  }
}

</mosaic_0001>

<llo_original>
// kernel: tpu_custom_call.1
$region0: #{tpu_custom_call.1}
  #allocation0 [shape = 'u32[]', space=smem, size = 0x4, offset = 0x4, fixed_abs, tag = 'smem constant byte address 0x4 - core index']
  #allocation1 [shape = 'u32[144,128]{1,0:T(1,128)}', space=vmem, size = 0x12000, scoped, tag = 'internal scratch']
  %s0 = inlined_call_operand.vmem [shape: bf16[6,8,64], index: 0, kind: input, shape index: {}]
  %s1 = inlined_call_operand.vmem [shape: bf16[6,256,64], index: 1, kind: input, shape index: {}]
  %s2 = inlined_call_operand.vmem [shape: f32[6,1,256], index: 2, kind: input, shape index: {}]
  %s3 = inlined_call_operand.vmem [shape: f32[6,1,256], index: 3, kind: input, shape index: {}]
  %s4 = inlined_call_operand.vmem [shape: bf16[6,128,256], index: 4, kind: input, shape index: {}]
  %s5 = inlined_call_operand.vmem [shape: f32[6,1,128], index: 5, kind: input, shape index: {}]
  %s6 = inlined_call_operand.hbm [shape: f32[6,8,256], index: 6, kind: output, shape index: {0}]
  %s7 = inlined_call_operand.hbm [shape: f32[6,8,128], index: 7, kind: output, shape index: {1}]
  %8 = xla_tuple %s6, %s7
  %s9 = sld [smem:[#allocation0]]
  $region65: #{tpu_custom_call.1} parent=0
    _
  %s11 = ssub.s32 1, %s9
  %s12 = scalar_select 0, %s11, %s9
  $region1: #{tpu_custom_call.1} parent=0
    #allocation2 [shape = 'u8[16384]{0}', space=vmem, size = 0x4000, scoped, tag = 'output window, operand 0']
    #allocation3 [shape = 's32[2]{0}', space=sflag, size = 0x8, scoped, tag = 'scoped memory for tpu_custom_call.1']
    #allocation4 [shape = 'u8[8192]{0}', space=vmem, size = 0x2000, scoped, tag = 'output window, operand 1']
    #allocation5 [shape = 's32[2]{0}', space=sflag, size = 0x8, scoped, tag = 'scoped memory for tpu_custom_call.1']
    %13 = vsyncpa [#allocation3], 0
    %s14 = scalar_lea.sflag [#allocation3], 1
    %15 = vsyncpa %s14, 0
    %16 = vsyncpa [#allocation5], 0
    %s17 = scalar_lea.sflag [#allocation5], 1
    %18 = vsyncpa %s17, 0
    loop: start=0, step=1, limit=8
    $region2: #{tpu_custom_call.1} parent=1 // loop_pre_header
      _
    $region3: #{tpu_custom_call.1} parent=1 // loop_header
      %s20 = sphi 0, %s24
      %p21 = scmp.ge.s32.totalorder %s20, 8
      %s30 = sphi 0, %s32
      %s33 = sphi 0, %s30
      %s34 = sphi 0, %s33
      %s50 = sphi 0, %s34
      %s56 = sphi 0, %s58
      %s59 = sphi 0, %s56
      %s60 = sphi 0, %s59
      %s76 = sphi 0, %s60
      %s82 = sphi 0, %s84
      %s85 = sphi 0, %s82
      %s86 = sphi 0, %s85
      %s102 = sphi 0, %s86
      %s108 = sphi 0, %s110
      %s111 = sphi 0, %s108
      %s112 = sphi 0, %s111
      %s128 = sphi 0, %s112
      %s134 = sphi 0, %s136
      %s137 = sphi 0, %s134
      %s138 = sphi 0, %s137
      %s154 = sphi 0, %s138
      %s160 = sphi 0, %s162
      %s163 = sphi 0, %s160
      %s164 = sphi 0, %s163
      %s180 = sphi 0, %s164
      %s186 = sphi 0, %s188
      %s189 = sphi 0, %s186
      %s190 = sphi 0, %s189
      %s206 = sphi 0, %s190
      %s212 = sphi 0, %s214
      %s215 = sphi 0, %s212
      %s216 = sphi 0, %s215
      %s232 = sphi 0, %s216
    $region4: #{tpu_custom_call.1} parent=1 // loop_header_branch
      %23 = sbr.rel (%p21) target = $region8
    $region5: #{tpu_custom_call.1} parent=1 // loop_body
      %s25 = ssub.s32 %s20, 1
      %s26 = ssub.s32 %s20, 2
      %s27 = sadd.s32 %s20, 1
      %s28 = ssub.s32 %s20, %s27
      %p29 = scmp.eq.s32.totalorder %s28, 0
      %s31 = sadd.s32 %s30, 1
      %s32 = scalar_select %p29, %s30, %s31
      %p35 = pneg %p29
      %p36 = scmp.eq.s32.totalorder %s20, 5
      %p37 = por %p35, %p36
      %p38 = scmp.ne.s32.totalorder %s30, %s33
      %p39 = scmp.eq.s32.totalorder %s20, 0
      %p40 = por %p38, %p39
      %p41 = scmp.ne.s32.totalorder %s30, %s33
      %p42 = scmp.eq.s32.totalorder %s25, 5
      %p43 = por %p41, %p42
      %p44 = scmp.ne.s32.totalorder %s33, %s34
      %p45 = scmp.eq.s32.totalorder %s25, 0
      %p46 = por %p44, %p45
      %p47 = scmp.ne.s32.totalorder %s33, %s34
      %p48 = scmp.eq.s32.totalorder %s26, 5
      %p49 = por %p47, %p48
      %p51 = scmp.ne.s32.totalorder %s34, %s50
      %p52 = scmp.eq.s32.totalorder %s26, 0
      %p53 = por %p51, %p52
      %s54 = ssub.s32 %s20, %s27
      %p55 = scmp.eq.s32.totalorder %s54, 0
      %s57 = sadd.s32 %s56, 1
      %s58 = scalar_select %p55, %s56, %s57
      %p61 = pneg %p55
      %p62 = scmp.eq.s32.totalorder %s20, 5
      %p63 = por %p61, %p62
      %p64 = scmp.ne.s32.totalorder %s56, %s59
      %p65 = scmp.eq.s32.totalorder %s20, 0
      %p66 = por %p64, %p65
      %p67 = scmp.ne.s32.totalorder %s56, %s59
      %p68 = scmp.eq.s32.totalorder %s25, 5
      %p69 = por %p67, %p68
      %p70 = scmp.ne.s32.totalorder %s59, %s60
      %p71 = scmp.eq.s32.totalorder %s25, 0
      %p72 = por %p70, %p71
      %p73 = scmp.ne.s32.totalorder %s59, %s60
      %p74 = scmp.eq.s32.totalorder %s26, 5
      %p75 = por %p73, %p74
      %p77 = scmp.ne.s32.totalorder %s60, %s76
      %p78 = scmp.eq.s32.totalorder %s26, 0
      %p79 = por %p77, %p78
      %s80 = ssub.s32 %s20, %s27
      %p81 = scmp.eq.s32.totalorder %s80, 0
      %s83 = sadd.s32 %s82, 1
      %s84 = scalar_select %p81, %s82, %s83
      %p87 = pneg %p81
      %p88 = scmp.eq.s32.totalorder %s20, 5
      %p89 = por %p87, %p88
      %p90 = scmp.ne.s32.totalorder %s82, %s85
      %p91 = scmp.eq.s32.totalorder %s20, 0
      %p92 = por %p90, %p91
      %p93 = scmp.ne.s32.totalorder %s82, %s85
      %p94 = scmp.eq.s32.totalorder %s25, 5
      %p95 = por %p93, %p94
      %p96 = scmp.ne.s32.totalorder %s85, %s86
      %p97 = scmp.eq.s32.totalorder %s25, 0
      %p98 = por %p96, %p97
      %p99 = scmp.ne.s32.totalorder %s85, %s86
      %p100 = scmp.eq.s32.totalorder %s26, 5
      %p101 = por %p99, %p100
      %p103 = scmp.ne.s32.totalorder %s86, %s102
      %p104 = scmp.eq.s32.totalorder %s26, 0
      %p105 = por %p103, %p104
      %s106 = ssub.s32 %s20, %s27
      %p107 = scmp.eq.s32.totalorder %s106, 0
      %s109 = sadd.s32 %s108, 1
      %s110 = scalar_select %p107, %s108, %s109
      %p113 = pneg %p107
      %p114 = scmp.eq.s32.totalorder %s20, 5
      %p115 = por %p113, %p114
      %p116 = scmp.ne.s32.totalorder %s108, %s111
      %p117 = scmp.eq.s32.totalorder %s20, 0
      %p118 = por %p116, %p117
      %p119 = scmp.ne.s32.totalorder %s108, %s111
      %p120 = scmp.eq.s32.totalorder %s25, 5
      %p121 = por %p119, %p120
      %p122 = scmp.ne.s32.totalorder %s111, %s112
      %p123 = scmp.eq.s32.totalorder %s25, 0
      %p124 = por %p122, %p123
      %p125 = scmp.ne.s32.totalorder %s111, %s112
      %p126 = scmp.eq.s32.totalorder %s26, 5
      %p127 = por %p125, %p126
      %p129 = scmp.ne.s32.totalorder %s112, %s128
      %p130 = scmp.eq.s32.totalorder %s26, 0
      %p131 = por %p129, %p130
      %s132 = ssub.s32 %s20, %s27
      %p133 = scmp.eq.s32.totalorder %s132, 0
      %s135 = sadd.s32 %s134, 1
      %s136 = scalar_select %p133, %s134, %s135
      %p139 = pneg %p133
      %p140 = scmp.eq.s32.totalorder %s20, 5
      %p141 = por %p139, %p140
      %p142 = scmp.ne.s32.totalorder %s134, %s137
      %p143 = scmp.eq.s32.totalorder %s20, 0
      %p144 = por %p142, %p143
      %p145 = scmp.ne.s32.totalorder %s134, %s137
      %p146 = scmp.eq.s32.totalorder %s25, 5
      %p147 = por %p145, %p146
      %p148 = scmp.ne.s32.totalorder %s137, %s138
      %p149 = scmp.eq.s32.totalorder %s25, 0
      %p150 = por %p148, %p149
      %p151 = scmp.ne.s32.totalorder %s137, %s138
      %p152 = scmp.eq.s32.totalorder %s26, 5
      %p153 = por %p151, %p152
      %p155 = scmp.ne.s32.totalorder %s138, %s154
      %p156 = scmp.eq.s32.totalorder %s26, 0
      %p157 = por %p155, %p156
      %s158 = ssub.s32 %s20, %s27
      %p159 = scmp.eq.s32.totalorder %s158, 0
      %s161 = sadd.s32 %s160, 1
      %s162 = scalar_select %p159, %s160, %s161
      %p165 = pneg %p159
      %p166 = scmp.eq.s32.totalorder %s20, 5
      %p167 = por %p165, %p166
      %p168 = scmp.ne.s32.totalorder %s160, %s163
      %p169 = scmp.eq.s32.totalorder %s20, 0
      %p170 = por %p168, %p169
      %p171 = scmp.ne.s32.totalorder %s160, %s163
      %p172 = scmp.eq.s32.totalorder %s25, 5
      %p173 = por %p171, %p172
      %p174 = scmp.ne.s32.totalorder %s163, %s164
      %p175 = scmp.eq.s32.totalorder %s25, 0
      %p176 = por %p174, %p175
      %p177 = scmp.ne.s32.totalorder %s163, %s164
      %p178 = scmp.eq.s32.totalorder %s26, 5
      %p179 = por %p177, %p178
      %p181 = scmp.ne.s32.totalorder %s164, %s180
      %p182 = scmp.eq.s32.totalorder %s26, 0
      %p183 = por %p181, %p182
      %s184 = ssub.s32 %s20, %s27
      %p185 = scmp.eq.s32.totalorder %s184, 0
      %s187 = sadd.s32 %s186, 1
      %s188 = scalar_select %p185, %s186, %s187
      %p191 = pneg %p185
      %p192 = scmp.eq.s32.totalorder %s20, 5
      %p193 = por %p191, %p192
      %p194 = scmp.ne.s32.totalorder %s186, %s189
      %p195 = scmp.eq.s32.totalorder %s20, 0
      %p196 = por %p194, %p195
      %p197 = scmp.ne.s32.totalorder %s186, %s189
      %p198 = scmp.eq.s32.totalorder %s25, 5
      %p199 = por %p197, %p198
      %p200 = scmp.ne.s32.totalorder %s189, %s190
      %p201 = scmp.eq.s32.totalorder %s25, 0
      %p202 = por %p200, %p201
      %p203 = scmp.ne.s32.totalorder %s189, %s190
      %p204 = scmp.eq.s32.totalorder %s26, 5
      %p205 = por %p203, %p204
      %p207 = scmp.ne.s32.totalorder %s190, %s206
      %p208 = scmp.eq.s32.totalorder %s26, 0
      %p209 = por %p207, %p208
      %s210 = ssub.s32 %s20, %s27
      %p211 = scmp.eq.s32.totalorder %s210, 0
      %s213 = sadd.s32 %s212, 1
      %s214 = scalar_select %p211, %s212, %s213
      %p217 = pneg %p211
      %p218 = scmp.eq.s32.totalorder %s20, 5
      %p219 = por %p217, %p218
      %p220 = scmp.ne.s32.totalorder %s212, %s215
      %p221 = scmp.eq.s32.totalorder %s20, 0
      %p222 = por %p220, %p221
      %p223 = scmp.ne.s32.totalorder %s212, %s215
      %p224 = scmp.eq.s32.totalorder %s25, 5
      %p225 = por %p223, %p224
      %p226 = scmp.ne.s32.totalorder %s215, %s216
      %p227 = scmp.eq.s32.totalorder %s25, 0
      %p228 = por %p226, %p227
      %p229 = scmp.ne.s32.totalorder %s215, %s216
      %p230 = scmp.eq.s32.totalorder %s26, 5
      %p231 = por %p229, %p230
      %p233 = scmp.ne.s32.totalorder %s216, %s232
      %p234 = scmp.eq.s32.totalorder %s26, 0
      %p235 = por %p233, %p234
      %p236 = scmp.le.s32.totalorder 1, %s20
      %p237 = scmp.lt.s32.totalorder %s20, 7
      %p238 = pnand %p236, %p237
      %p239 = pneg %p238
      // Predicated region
      $region9: #{tpu_custom_call.1} parent=5 // pred_check
        _
      $region10: #{tpu_custom_call.1} parent=5 // pred_check_branch
        %241 = sbr.rel (%p238) target = $region12
      $region11: #{tpu_custom_call.1} parent=5 // pred_region
        %s242 = ssub.s32 %s20, 1
      $region12: #{tpu_custom_call.1} parent=5 // pred_fallthru
        _
      %p243 = scmp.lt.s32.totalorder %s20, 6
      // Predicated region
      $region13: #{tpu_custom_call.1} parent=5 // pred_check
        %p244 = pneg %p243
      $region14: #{tpu_custom_call.1} parent=5 // pred_check_branch
        %246 = sbr.rel (%p244) target = $region16
      $region15: #{tpu_custom_call.1} parent=5 // pred_region
        // Predicated region
        $region17: #{tpu_custom_call.1} parent=15 // pred_check
          %p247 = pneg %p40
        $region18: #{tpu_custom_call.1} parent=15 // pred_check_branch
          %249 = sbr.rel (%p247) target = $region20
        $region19: #{tpu_custom_call.1} parent=15 // pred_region
          %p250 = scmp.lt.s32.totalorder %s20, 5
          %s251 = scalar_select %p250, %s20, 5
          %s252 = smul.addr %s251, 4
          %s253 = scalar_lea.vmem %s0, %s252
        $region20: #{tpu_custom_call.1} parent=15 // pred_fallthru
          _
        // Predicated region
        $region21: #{tpu_custom_call.1} parent=15 // pred_check
          %p254 = pneg %p66
        $region22: #{tpu_custom_call.1} parent=15 // pred_check_branch
          %256 = sbr.rel (%p254) target = $region24
        $region23: #{tpu_custom_call.1} parent=15 // pred_region
          %p257 = scmp.lt.s32.totalorder %s20, 5
          %s258 = scalar_select %p257, %s20, 5
          %s259 = smul.addr %s258, 32
          %s260 = smul.addr %s259, 4
          %s261 = scalar_lea.vmem %s1, %s260
        $region24: #{tpu_custom_call.1} parent=15 // pred_fallthru
          _
        // Predicated region
        $region25: #{tpu_custom_call.1} parent=15 // pred_check
          %p262 = pneg %p92
        $region26: #{tpu_custom_call.1} parent=15 // pred_check_branch
          %264 = sbr.rel (%p262) target = $region28
        $region27: #{tpu_custom_call.1} parent=15 // pred_region
          %p265 = scmp.lt.s32.totalorder %s20, 5
          %s266 = scalar_select %p265, %s20, 5
          %s267 = smul.addr %s266, 2
          %s268 = scalar_lea.vmem %s2, %s267
        $region28: #{tpu_custom_call.1} parent=15 // pred_fallthru
          _
        // Predicated region
        $region29: #{tpu_custom_call.1} parent=15 // pred_check
          %p269 = pneg %p118
        $region30: #{tpu_custom_call.1} parent=15 // pred_check_branch
          %271 = sbr.rel (%p269) target = $region32
        $region31: #{tpu_custom_call.1} parent=15 // pred_region
          %p272 = scmp.lt.s32.totalorder %s20, 5
          %s273 = scalar_select %p272, %s20, 5
          %s274 = smul.addr %s273, 2
          %s275 = scalar_lea.vmem %s3, %s274
        $region32: #{tpu_custom_call.1} parent=15 // pred_fallthru
          _
        // Predicated region
        $region33: #{tpu_custom_call.1} parent=15 // pred_check
          %p276 = pneg %p144
        $region34: #{tpu_custom_call.1} parent=15 // pred_check_branch
          %278 = sbr.rel (%p276) target = $region36
        $region35: #{tpu_custom_call.1} parent=15 // pred_region
          %p279 = scmp.lt.s32.totalorder %s20, 5
          %s280 = scalar_select %p279, %s20, 5
          %s281 = smul.addr %s280, 32
          %s282 = smul.addr %s281, 4
          %s283 = scalar_lea.vmem %s4, %s282
        $region36: #{tpu_custom_call.1} parent=15 // pred_fallthru
          _
        // Predicated region
        $region37: #{tpu_custom_call.1} parent=15 // pred_check
          %p284 = pneg %p170
        $region38: #{tpu_custom_call.1} parent=15 // pred_check_branch
          %286 = sbr.rel (%p284) target = $region40
        $region39: #{tpu_custom_call.1} parent=15 // pred_region
          %p287 = scmp.lt.s32.totalorder %s20, 5
          %s288 = scalar_select %p287, %s20, 5
          %s289 = scalar_lea.vmem %s5, %s288
        $region40: #{tpu_custom_call.1} parent=15 // pred_fallthru
          _
      $region16: #{tpu_custom_call.1} parent=5 // pred_fallthru
        _
      %p290 = scmp.le.s32.totalorder 1, %s20
      %p291 = scmp.lt.s32.totalorder %s20, 7
      %p292 = pnand %p290, %p291
      %p293 = pneg %p292
      // Predicated region
      $region41: #{tpu_custom_call.1} parent=5 // pred_check
        _
      $region42: #{tpu_custom_call.1} parent=5 // pred_check_branch
        %295 = sbr.rel (%p292) target = $region44
      $region43: #{tpu_custom_call.1} parent=5 // pred_region
        %s296 = ssub.s32 %s20, 1
        %p297 = scmp.lt.s32.totalorder %s25, 5
        %s298 = scalar_select %p297, %s25, 5
        %s299 = smul.addr %s298, 4
        %s300 = scalar_lea.vmem %s0, %s299
        %p301 = pneg %p46
        %p302 = pneg %p43
        %p303 = scmp.lt.s32.totalorder %s25, 5
        %s304 = scalar_select %p303, %s25, 5
        %s305 = smul.addr %s304, 32
        %s306 = smul.addr %s305, 4
        %s307 = scalar_lea.vmem %s1, %s306
        %p308 = pneg %p72
        %p309 = pneg %p69
        %p310 = scmp.lt.s32.totalorder %s25, 5
        %s311 = scalar_select %p310, %s25, 5
        %s312 = smul.addr %s311, 2
        %s313 = scalar_lea.vmem %s2, %s312
        %p314 = pneg %p98
        %p315 = pneg %p95
        %p316 = scmp.lt.s32.totalorder %s25, 5
        %s317 = scalar_select %p316, %s25, 5
        %s318 = smul.addr %s317, 2
        %s319 = scalar_lea.vmem %s3, %s318
        %p320 = pneg %p124
        %p321 = pneg %p121
        %p322 = scmp.lt.s32.totalorder %s25, 5
        %s323 = scalar_select %p322, %s25, 5
        %s324 = smul.addr %s323, 32
        %s325 = smul.addr %s324, 4
        %s326 = scalar_lea.vmem %s4, %s325
        %p327 = pneg %p150
        %p328 = pneg %p147
        %p329 = scmp.lt.s32.totalorder %s25, 5
        %s330 = scalar_select %p329, %s25, 5
        %s331 = scalar_lea.vmem %s5, %s330
        %p332 = pneg %p176
        %p333 = pneg %p173
        %p334 = pneg %p202
        %p335 = pneg %p199
        %s336 = sand.u32 %s189, 1
        %s337 = scalar_lea.sflag [#allocation3], %s336
        %s338 = sand.u32 %s189, 1
        %s339 = smul.addr %s338, 16
        %s340 = scalar_lea.vmem [#allocation2], %s339
        %p341 = pneg %p228
        %p342 = pneg %p225
        %s343 = sand.u32 %s215, 1
        %s344 = scalar_lea.sflag [#allocation5], %s343
        %s345 = sand.u32 %s215, 1
        %s346 = smul.addr %s345, 8
        %s347 = scalar_lea.vmem [#allocation4], %s346
        %p348 = scmp.lt.s32.totalorder %s25, 5
        %s349 = scalar_select %p348, %s25, 5
        %s350 = smul.addr %s349, 4
        %s351 = scalar_lea.vmem %s0, %s350
        %p352 = scmp.lt.s32.totalorder %s25, 5
        %s353 = scalar_select %p352, %s25, 5
        %s354 = smul.addr %s353, 32
        %s355 = smul.addr %s354, 4
        %s356 = scalar_lea.vmem %s1, %s355
        %p357 = scmp.lt.s32.totalorder %s25, 5
        %s358 = scalar_select %p357, %s25, 5
        %s359 = smul.addr %s358, 2
        %s360 = scalar_lea.vmem %s2, %s359
        %p361 = scmp.lt.s32.totalorder %s25, 5
        %s362 = scalar_select %p361, %s25, 5
        %s363 = smul.addr %s362, 2
        %s364 = scalar_lea.vmem %s3, %s363
        %p365 = scmp.lt.s32.totalorder %s25, 5
        %s366 = scalar_select %p365, %s25, 5
        %s367 = smul.addr %s366, 32
        %s368 = smul.addr %s367, 4
        %s369 = scalar_lea.vmem %s4, %s368
        %p370 = scmp.lt.s32.totalorder %s25, 5
        %s371 = scalar_select %p370, %s25, 5
        %s372 = scalar_lea.vmem %s5, %s371
        %v374 = vld [vmem:[%s351] sm:$0xf]
        %v375 = vld [vmem:[%s356] sm:$0xf]
        %v376 = vld [vmem:[%s356 + $0x4] sm:$0xf]
        %v377 = vld [vmem:[%s356 + $0x8] sm:$0xf]
        %v378 = vld [vmem:[%s356 + $0xc] sm:$0xf]
        %v379 = vld [vmem:[%s356 + $0x10] sm:$0xf]
        %v380 = vld [vmem:[%s356 + $0x14] sm:$0xf]
        %v381 = vld [vmem:[%s356 + $0x18] sm:$0xf]
        %v382 = vld [vmem:[%s356 + $0x1c] sm:$0xf]
        %v383 = vld [vmem:[%s356 + $0x20] sm:$0xf]
        %v384 = vld [vmem:[%s356 + $0x24] sm:$0xf]
        %v385 = vld [vmem:[%s356 + $0x28] sm:$0xf]
        %v386 = vld [vmem:[%s356 + $0x2c] sm:$0xf]
        %v387 = vld [vmem:[%s356 + $0x30] sm:$0xf]
        %v388 = vld [vmem:[%s356 + $0x34] sm:$0xf]
        %v389 = vld [vmem:[%s356 + $0x38] sm:$0xf]
        %v390 = vld [vmem:[%s356 + $0x3c] sm:$0xf]
        %v391 = vld [vmem:[%s356 + $0x40] sm:$0xf]
        %v392 = vld [vmem:[%s356 + $0x44] sm:$0xf]
        %v393 = vld [vmem:[%s356 + $0x48] sm:$0xf]
        %v394 = vld [vmem:[%s356 + $0x4c] sm:$0xf]
        %v395 = vld [vmem:[%s356 + $0x50] sm:$0xf]
        %v396 = vld [vmem:[%s356 + $0x54] sm:$0xf]
        %v397 = vld [vmem:[%s356 + $0x58] sm:$0xf]
        %v398 = vld [vmem:[%s356 + $0x5c] sm:$0xf]
        %v399 = vld [vmem:[%s356 + $0x60] sm:$0xf]
        %v400 = vld [vmem:[%s356 + $0x64] sm:$0xf]
        %v401 = vld [vmem:[%s356 + $0x68] sm:$0xf]
        %v402 = vld [vmem:[%s356 + $0x6c] sm:$0xf]
        %v403 = vld [vmem:[%s356 + $0x70] sm:$0xf]
        %v404 = vld [vmem:[%s356 + $0x74] sm:$0xf]
        %v405 = vld [vmem:[%s356 + $0x78] sm:$0xf]
        %v406 = vld [vmem:[%s356 + $0x7c] sm:$0xf]
        %v439 = vunpack.c.l.b16 %v375
        %v440 = vunpack.c.l.b16 %v376
        %v441 = vunpack.c.l.b16 %v377
        %v442 = vunpack.c.l.b16 %v378
        %v443 = vunpack.c.l.b16 %v379
        %v444 = vunpack.c.l.b16 %v380
        %v445 = vunpack.c.l.b16 %v381
        %v446 = vunpack.c.l.b16 %v382
        %v447 = vunpack.c.l.b16 %v383
        %v448 = vunpack.c.l.b16 %v384
        %v449 = vunpack.c.l.b16 %v385
        %v450 = vunpack.c.l.b16 %v386
        %v451 = vunpack.c.l.b16 %v387
        %v452 = vunpack.c.l.b16 %v388
        %v453 = vunpack.c.l.b16 %v389
        %v454 = vunpack.c.l.b16 %v390
        %v455 = vunpack.c.l.b16 %v391
        %v456 = vunpack.c.l.b16 %v392
        %v457 = vunpack.c.l.b16 %v393
        %v458 = vunpack.c.l.b16 %v394
        %v459 = vunpack.c.l.b16 %v395
        %v460 = vunpack.c.l.b16 %v396
        %v461 = vunpack.c.l.b16 %v397
        %v462 = vunpack.c.l.b16 %v398
        %v463 = vunpack.c.l.b16 %v399
        %v464 = vunpack.c.l.b16 %v400
        %v465 = vunpack.c.l.b16 %v401
        %v466 = vunpack.c.l.b16 %v402
        %v467 = vunpack.c.l.b16 %v403
        %v468 = vunpack.c.l.b16 %v404
        %v469 = vunpack.c.l.b16 %v405
        %v470 = vunpack.c.l.b16 %v406
        %v471 = vpack.c.b16 %v440, %v439
        %v472 = vpack.c.b16 %v442, %v441
        %v473 = vpack.c.b16 %v444, %v443
        %v474 = vpack.c.b16 %v446, %v445
        %v475 = vpack.c.b16 %v448, %v447
        %v476 = vpack.c.b16 %v450, %v449
        %v477 = vpack.c.b16 %v452, %v451
        %v478 = vpack.c.b16 %v454, %v453
        %v479 = vpack.c.b16 %v456, %v455
        %v480 = vpack.c.b16 %v458, %v457
        %v481 = vpack.c.b16 %v460, %v459
        %v482 = vpack.c.b16 %v462, %v461
        %v483 = vpack.c.b16 %v464, %v463
        %v484 = vpack.c.b16 %v466, %v465
        %v485 = vpack.c.b16 %v468, %v467
        %v486 = vpack.c.b16 %v470, %v469
        %vm487 = vcmask 523264
        %v489 = vsel %vm487, %v374, 0
        %v492 = vsel %vm487, %v471, 0
        %v495 = vsel %vm487, %v472, 0
        %v498 = vsel %vm487, %v473, 0
        %v501 = vsel %vm487, %v474, 0
        %v504 = vsel %vm487, %v475, 0
        %v507 = vsel %vm487, %v476, 0
        %v510 = vsel %vm487, %v477, 0
        %v513 = vsel %vm487, %v478, 0
        %v516 = vsel %vm487, %v479, 0
        %v519 = vsel %vm487, %v480, 0
        %v522 = vsel %vm487, %v481, 0
        %v525 = vsel %vm487, %v482, 0
        %v528 = vsel %vm487, %v483, 0
        %v531 = vsel %vm487, %v484, 0
        %v534 = vsel %vm487, %v485, 0
        %v537 = vsel %vm487, %v486, 0
        %539 = vmatprep.subr.bf16.mxu0 0
        %540 = vmatpush1.bf16.xpose.msra.mxu0 %v492
        %541 = vmatprep.subr.bf16.mxu0 0
        %542 = vmatpush1.bf16.xpose.msra.mxu0 %v495
        %543 = vmatprep.subr.bf16.mxu0 0
        %544 = vmatpush1.bf16.xpose.msra.mxu0 %v498
        %545 = vmatprep.subr.bf16.mxu0 0
        %546 = vmatpush1.bf16.xpose.msra.mxu0 %v501
        %547 = vmatprep.subr.bf16.mxu0 0
        %548 = vmatpush1.bf16.xpose.msra.mxu0 %v504
        %549 = vmatprep.subr.bf16.mxu0 0
        %550 = vmatpush1.bf16.xpose.msra.mxu0 %v507
        %551 = vmatprep.subr.bf16.mxu0 0
        %552 = vmatpush1.bf16.xpose.msra.mxu0 %v510
        %553 = vmatprep.subr.bf16.mxu0 0
        %554 = vmatpush1.bf16.xpose.msra.mxu0 %v513
        %555 = vmatprep.subr.bf16.mxu0 0
        %556 = vmatpush1.bf16.xpose.msra.mxu0 %v516
        %557 = vmatprep.subr.bf16.mxu0 0
        %558 = vmatpush1.bf16.xpose.msra.mxu0 %v519
        %559 = vmatprep.subr.bf16.mxu0 0
        %560 = vmatpush1.bf16.xpose.msra.mxu0 %v522
        %561 = vmatprep.subr.bf16.mxu0 0
        %562 = vmatpush1.bf16.xpose.msra.mxu0 %v525
        %563 = vmatprep.subr.bf16.mxu0 0
        %564 = vmatpush1.bf16.xpose.msra.mxu0 %v528
        %565 = vmatprep.subr.bf16.mxu0 0
        %566 = vmatpush1.bf16.xpose.msra.mxu0 %v531
        %567 = vmatprep.subr.bf16.mxu0 0
        %568 = vmatpush1.bf16.xpose.msra.mxu0 %v534
        %569 = vmatprep.subr.bf16.mxu0 0
        %570 = vmatpush1.bf16.xpose.msra.mxu0 %v537
        %571 = vmatprep.mubr.bf16.mxu0 0
        %572 = vmatmul.mubr.bf16.gmra.mrb[0].mxu0 %v489
        %v573 = vpop.f32.mrb[0].mxu0
        %v574 = vadd.f32 0.0, %v573
        %v575 = vpop.f32.mrb[0].mxu0
        %v576 = vadd.f32 0.0, %v575
        %v577 = vpop.f32.mrb[0].mxu0
        %v578 = vpop.f32.mrb[0].mxu0
        %579 = vdwg.mxu0
        %v580 = vrot.slane %v574, 4
        %v581 = vadd.f32 %v574, %v580
        %v582 = vrot.slane %v581, 2
        %v583 = vadd.f32 %v581, %v582
        %v584 = vrot.slane %v583, 1
        %v585 = vadd.f32 %v583, %v584
        %v586 = vrot.slane %v576, 4
        %v587 = vadd.f32 %v576, %v586
        %v588 = vrot.slane %v587, 2
        %v589 = vadd.f32 %v587, %v588
        %v590 = vrot.slane %v589, 1
        %v591 = vadd.f32 %v589, %v590
        %v592 = vmul.f32 %v585, 0.125
        %v593 = vmul.f32 %v591, 0.125
        %v594 = vmul.f32 %v574, %v574
        %v595 = vmul.f32 %v576, %v576
        %v596 = vrot.slane %v594, 4
        %v597 = vadd.f32 %v594, %v596
        %v598 = vrot.slane %v597, 2
        %v599 = vadd.f32 %v597, %v598
        %v600 = vrot.slane %v599, 1
        %v601 = vadd.f32 %v599, %v600
        %v602 = vrot.slane %v595, 4
        %v603 = vadd.f32 %v595, %v602
        %v604 = vrot.slane %v603, 2
        %v605 = vadd.f32 %v603, %v604
        %v606 = vrot.slane %v605, 1
        %v607 = vadd.f32 %v605, %v606
        %v608 = vmul.f32 %v601, 0.125
        %v609 = vmul.f32 %v607, 0.125
        %v610 = vmul.f32 %v592, %v592
        %v611 = vmul.f32 %v593, %v593
        %v612 = vsub.f32 %v608, %v610
        %v613 = vsub.f32 %v609, %v611
        %v614 = vsub.f32 %v574, %v592
        %v615 = vsub.f32 %v576, %v593
        %v616 = vadd.f32 %v612, 1e-05
        %v617 = vadd.f32 %v613, 1e-05
        %v618 = vrsqrt.pop %v616
        %v619 = vrsqrt.pop %v617
        %v620 = vmul.f32 %v614, %v618
        %v621 = vmul.f32 %v615, %v619
        %v622 = vld [vmem:[%s360] sm:$0x3]
        %v624 = vlaneseq
        %v625 = vshrl.u32 %v624, 7
        %v626 = vsub.s32 0, %v625
        %v627 = vrot.slane %v622, %v626
        %v628 = vlaneseq
        %v629 = vshrl.u32 %v628, 7
        %v630 = vsub.s32 1, %v629
        %v631 = vrot.slane %v622, %v630
        %v634 = vmul.f32 %v620, %v627
        %v635 = vmul.f32 %v621, %v631
        %v636 = vld [vmem:[%s364] sm:$0x3]
        %v638 = vlaneseq
        %v639 = vshrl.u32 %v638, 7
        %v640 = vsub.s32 0, %v639
        %v641 = vrot.slane %v636, %v640
        %v642 = vlaneseq
        %v643 = vshrl.u32 %v642, 7
        %v644 = vsub.s32 1, %v643
        %v645 = vrot.slane %v636, %v644
        %v648 = vadd.f32 %v634, %v641
        %v649 = vadd.f32 %v635, %v645
        %v650 = vmax.f32 %v648, 0.0
        %v651 = vmax.f32 %v649, 0.0
        %652 = vst [vmem:[%s340] sm:$0xff] %v650
        %653 = vst [vmem:[%s340 + $0x8] sm:$0xff] %v651
        %v654 = vpack.c.bf16 %v650, %v650
        %v655 = vpack.c.bf16 %v651, %v651
        %v656 = vld [vmem:[%s369] sm:$0xff]
        %v657 = vld [vmem:[%s369 + $0x8] sm:$0xff]
        %v658 = vld [vmem:[%s369 + $0x10] sm:$0xff]
        %v659 = vld [vmem:[%s369 + $0x18] sm:$0xff]
        %v660 = vld [vmem:[%s369 + $0x20] sm:$0xff]
        %v661 = vld [vmem:[%s369 + $0x28] sm:$0xff]
        %v662 = vld [vmem:[%s369 + $0x30] sm:$0xff]
        %v663 = vld [vmem:[%s369 + $0x38] sm:$0xff]
        %v664 = vld [vmem:[%s369 + $0x40] sm:$0xff]
        %v665 = vld [vmem:[%s369 + $0x48] sm:$0xff]
        %v666 = vld [vmem:[%s369 + $0x50] sm:$0xff]
        %v667 = vld [vmem:[%s369 + $0x58] sm:$0xff]
        %v668 = vld [vmem:[%s369 + $0x60] sm:$0xff]
        %v669 = vld [vmem:[%s369 + $0x68] sm:$0xff]
        %v670 = vld [vmem:[%s369 + $0x70] sm:$0xff]
        %v671 = vld [vmem:[%s369 + $0x78] sm:$0xff]
        %v672 = vld [vmem:[%s372] sm:$0x1]
        %v674 = vlaneseq
        %v675 = vshrl.u32 %v674, 7
        %v676 = vsub.s32 0, %v675
        %v677 = vrot.slane %v672, %v676
        %v695 = vunpack.c.l.b16 %v656
        %v696 = vunpack.c.h.b16 %v656
        %v697 = vunpack.c.l.b16 %v657
        %v698 = vunpack.c.h.b16 %v657
        %v699 = vunpack.c.l.b16 %v658
        %v700 = vunpack.c.h.b16 %v658
        %v701 = vunpack.c.l.b16 %v659
        %v702 = vunpack.c.h.b16 %v659
        %v703 = vunpack.c.l.b16 %v660
        %v704 = vunpack.c.h.b16 %v660
        %v705 = vunpack.c.l.b16 %v661
        %v706 = vunpack.c.h.b16 %v661
        %v707 = vunpack.c.l.b16 %v662
        %v708 = vunpack.c.h.b16 %v662
        %v709 = vunpack.c.l.b16 %v663
        %v710 = vunpack.c.h.b16 %v663
        %v711 = vunpack.c.l.b16 %v664
        %v712 = vunpack.c.h.b16 %v664
        %v713 = vunpack.c.l.b16 %v665
        %v714 = vunpack.c.h.b16 %v665
        %v715 = vunpack.c.l.b16 %v666
        %v716 = vunpack.c.h.b16 %v666
        %v717 = vunpack.c.l.b16 %v667
        %v718 = vunpack.c.h.b16 %v667
        %v719 = vunpack.c.l.b16 %v668
        %v720 = vunpack.c.h.b16 %v668
        %v721 = vunpack.c.l.b16 %v669
        %v722 = vunpack.c.h.b16 %v669
        %v723 = vunpack.c.l.b16 %v670
        %v724 = vunpack.c.h.b16 %v670
        %v725 = vunpack.c.l.b16 %v671
        %v726 = vunpack.c.h.b16 %v671
        %v727 = vpack.c.b16 %v697, %v695
        %v728 = vpack.c.b16 %v698, %v696
        %v729 = vpack.c.b16 %v701, %v699
        %v730 = vpack.c.b16 %v702, %v700
        %v731 = vpack.c.b16 %v705, %v703
        %v732 = vpack.c.b16 %v706, %v704
        %v733 = vpack.c.b16 %v709, %v707
        %v734 = vpack.c.b16 %v710, %v708
        %v735 = vpack.c.b16 %v713, %v711
        %v736 = vpack.c.b16 %v714, %v712
        %v737 = vpack.c.b16 %v717, %v715
        %v738 = vpack.c.b16 %v718, %v716
        %v739 = vpack.c.b16 %v721, %v719
        %v740 = vpack.c.b16 %v722, %v720
        %v741 = vpack.c.b16 %v725, %v723
        %v742 = vpack.c.b16 %v726, %v724
        %759 = vmatprep.subr.bf16.mxu0 %v728
        %760 = vmatpush1.bf16.xpose.msra.mxu0 %v727
        %761 = vmatprep.subr.bf16.mxu0 %v730
        %762 = vmatpush1.bf16.xpose.msra.mxu0 %v729
        %763 = vmatprep.subr.bf16.mxu0 %v732
        %764 = vmatpush1.bf16.xpose.msra.mxu0 %v731
        %765 = vmatprep.subr.bf16.mxu0 %v734
        %766 = vmatpush1.bf16.xpose.msra.mxu0 %v733
        %767 = vmatprep.subr.bf16.mxu0 %v736
        %768 = vmatpush1.bf16.xpose.msra.mxu0 %v735
        %769 = vmatprep.subr.bf16.mxu0 %v738
        %770 = vmatpush1.bf16.xpose.msra.mxu0 %v737
        %771 = vmatprep.subr.bf16.mxu0 %v740
        %772 = vmatpush1.bf16.xpose.msra.mxu0 %v739
        %773 = vmatprep.subr.bf16.mxu0 %v742
        %774 = vmatpush1.bf16.xpose.msra.mxu0 %v741
        %775 = vmatprep.subr.bf16.mxu0 0
        %776 = vmatpush1.bf16.xpose.msra.mxu0 0
        %777 = vmatprep.subr.bf16.mxu0 0
        %778 = vmatpush1.bf16.xpose.msra.mxu0 0
        %779 = vmatprep.subr.bf16.mxu0 0
        %780 = vmatpush1.bf16.xpose.msra.mxu0 0
        %781 = vmatprep.subr.bf16.mxu0 0
        %782 = vmatpush1.bf16.xpose.msra.mxu0 0
        %783 = vmatprep.subr.bf16.mxu0 0
        %784 = vmatpush1.bf16.xpose.msra.mxu0 0
        %785 = vmatprep.subr.bf16.mxu0 0
        %786 = vmatpush1.bf16.xpose.msra.mxu0 0
        %787 = vmatprep.subr.bf16.mxu0 0
        %788 = vmatpush1.bf16.xpose.msra.mxu0 0
        %789 = vmatprep.subr.bf16.mxu0 0
        %790 = vmatpush1.bf16.xpose.msra.mxu0 0
        %791 = vmatprep.mubr.bf16.mxu0 %v655
        %792 = vmatmul.mubr.bf16.gmra.mrb[0].mxu0 %v654
        %v793 = vpop.f32.mrb[0].mxu0
        %v794 = vadd.f32 %v677, %v793
        %v795 = vpop.f32.mrb[0].mxu0
        %v796 = vpop.f32.mrb[0].mxu0
        %v797 = vpop.f32.mrb[0].mxu0
        %798 = vdwg.mxu0
        %799 = vst [vmem:[%s347] sm:$0xff] %v794
        %s800 = sand.u32 %s189, 1
        %s801 = scalar_lea.sflag [#allocation3], %s800
        %s802 = sand.u32 %s189, 1
        %s803 = smul.addr %s802, 16
        %s804 = scalar_lea.vmem [#allocation2], %s803
        %s805 = sand.u32 %s215, 1
        %s806 = scalar_lea.sflag [#allocation5], %s805
        %s807 = sand.u32 %s215, 1
        %s808 = smul.addr %s807, 8
        %s809 = scalar_lea.vmem [#allocation4], %s808
        // Predicated region
        $region45: #{tpu_custom_call.1} parent=43 // pred_check
          %p810 = pneg %p199
        $region46: #{tpu_custom_call.1} parent=43 // pred_check_branch
          %812 = sbr.rel (%p810) target = $region48
        $region47: #{tpu_custom_call.1} parent=43 // pred_region
          %s814 = ssub.s32 256, 256
          %815 = vsyncadd %s801, %s814
          %s816 = smul.addr %s25, 2
          %s817 = smul.addr %s816, 128
          %s818 = scalar_lea.hbm %s6, %s817
          %s820 = sshll.u32 %s804, 4
          %s821 = int_to_ptr.vmem [resolvable:$true] %s820
          %823 = dma.vmem_to_hbm [thread:$0]  %s821, 256, %s818, %s801
        $region48: #{tpu_custom_call.1} parent=43 // pred_fallthru
          _
        // Predicated region
        $region49: #{tpu_custom_call.1} parent=43 // pred_check
          %p824 = pneg %p225
        $region50: #{tpu_custom_call.1} parent=43 // pred_check_branch
          %826 = sbr.rel (%p824) target = $region52
        $region51: #{tpu_custom_call.1} parent=43 // pred_region
          %s828 = ssub.s32 128, 128
          %829 = vsyncadd %s806, %s828
          %s830 = smul.addr %s25, 128
          %s831 = scalar_lea.hbm %s7, %s830
          %s833 = sshll.u32 %s809, 4
          %s834 = int_to_ptr.vmem [resolvable:$true] %s833
          %836 = dma.vmem_to_hbm [thread:$0]  %s834, 128, %s831, %s806
        $region52: #{tpu_custom_call.1} parent=43 // pred_fallthru
          _
      $region44: #{tpu_custom_call.1} parent=5 // pred_fallthru
        _
      %p837 = scmp.le.s32.totalorder 2, %s20
      // Predicated region
      $region53: #{tpu_custom_call.1} parent=5 // pred_check
        %p838 = pneg %p837
      $region54: #{tpu_custom_call.1} parent=5 // pred_check_branch
        %840 = sbr.rel (%p838) target = $region56
      $region55: #{tpu_custom_call.1} parent=5 // pred_region
        %s841 = ssub.s32 %s20, 2
        // Predicated region
        $region57: #{tpu_custom_call.1} parent=55 // pred_check
          %p842 = pneg %p205
        $region58: #{tpu_custom_call.1} parent=55 // pred_check_branch
          %844 = sbr.rel (%p842) target = $region60
        $region59: #{tpu_custom_call.1} parent=55 // pred_region
          %s845 = sand.u32 %s190, 1
          %s846 = scalar_lea.sflag [#allocation3], %s845
          %s847 = sand.u32 %s190, 1
          %s848 = smul.addr %s847, 16
          %s849 = scalar_lea.vmem [#allocation2], %s848
          %850 = dma.done %s846, 256
        $region60: #{tpu_custom_call.1} parent=55 // pred_fallthru
          _
        // Predicated region
        $region61: #{tpu_custom_call.1} parent=55 // pred_check
          %p851 = pneg %p231
        $region62: #{tpu_custom_call.1} parent=55 // pred_check_branch
          %853 = sbr.rel (%p851) target = $region64
        $region63: #{tpu_custom_call.1} parent=55 // pred_region
          %s854 = sand.u32 %s216, 1
          %s855 = scalar_lea.sflag [#allocation5], %s854
          %s856 = sand.u32 %s216, 1
          %s857 = smul.addr %s856, 8
          %s858 = scalar_lea.vmem [#allocation4], %s857
          %859 = dma.done %s855, 128
        $region64: #{tpu_custom_call.1} parent=55 // pred_fallthru
          _
      $region56: #{tpu_custom_call.1} parent=5 // pred_fallthru
        _
    $region6: #{tpu_custom_call.1} parent=1 // loop_footer
      %s24 = sadd.s32 1, %s20
    $region7: #{tpu_custom_call.1} parent=1 // loop_footer_branch
      %19 = sbr.rel target = $region3
    $region8: #{tpu_custom_call.1} parent=1 // loop_exit
      _
    %860 = vsyncpa [#allocation3], 1
    %s861 = scalar_lea.sflag [#allocation3], 1
    %862 = vsyncpa %s861, 1
    %863 = vsyncpa [#allocation5], 1
    %s864 = scalar_lea.sflag [#allocation5], 1
    %865 = vsyncpa %s864, 1

</llo_original>
